<compile_context>
chip_gen: v6e
topology: v6e:2x2x1
jax: 0.10.0
libtpu: 0.0.40
codegen_flags: <defaults>
</compile_context>

<pallas_src>
import jax
import jax.numpy as jnp
from jax.experimental import pallas as pl
from jax.experimental.pallas import tpu as pltpu


XYZ_DIM = 3
TASK_DIM = 1
XT_DIM = XYZ_DIM + TASK_DIM  # xyz + task columns, streamed together


def _actionability_kernel(px_ref, xyzt_ref,
                          w1p_ref, w1xt_ref, b1_ref,
                          w2_ref, b2_ref, out_ref):
    # px:   (TB, F)  bf16        w1p:  (F, F)  bf16
    # xyzt: (TB, 4)  f32         w1xt: (4, F)  f32     b1: (1, F) f32
    # w2:   (F, 2)   f32         b2:   (1, 2)  f32     out: (TB, 2) f32

    # Main matmul: bf16 x bf16 -> f32 accumulation on the MXU.
    h = jnp.dot(px_ref[...], w1p_ref[...], preferred_element_type=jnp.float32)

    # xyz + task contribution: 4 rank-1 updates on the VPU (avoids a K=4 MXU
    # pass that would cost as much as a K=128 one).  All f32.
    xt = xyzt_ref[...]                                   # (TB, 4)
    for k in range(XT_DIM):
        h = h + xt[:, k:k + 1] * w1xt_ref[k:k + 1, :]
    h = h + b1_ref[...]

    # leaky_relu, negative_slope = 0.01: one vmul + one vmax.
    h = jnp.maximum(h, jnp.float32(0.01) * h)

    # Second layer (F -> 2).  Tiny; the kernel is mem-bound so the partially
    # used MXU pass is hidden (move to VPU+XLU reductions only if profiling
    # ever shows the MXU as the binding slot).
    out = jnp.dot(h, w2_ref[...], preferred_element_type=jnp.float32)
    out = out + b2_ref[...]

    # Square only column 1 (uncertainty); write one lane-dense (TB, 2) slab.
    col = jax.lax.broadcasted_iota(jnp.int32, out.shape, dimension=1)
    out_ref[...] = jnp.where(col == 1, out * out, out)


def _round_up(x, m):
    return ((x + m - 1) // m) * m


def actionability_net(pixel_feats, xyzs, tasks, params, *, tile_b=1024):
    """Pallas-backed forward pass of ActionabilityNet.

    pixel_feats: (B, F)
    xyzs:        (B, 3)
    tasks:       (B, 1)
    params: dict with w1 (F+4, F), b1 (F,), w2 (F, 2), b2 (2,)
    Returns (actionability (B, 1), uncertainty (B, 1)), both float32.
    """
    B, F = pixel_feats.shape
    assert xyzs.shape == (B, XYZ_DIM)
    assert tasks.shape == (B, TASK_DIM)

    # Split w1 at trace time so the kernel never needs the concatenated input.
    w1 = params["w1"]
    w1p = w1[:F, :].astype(jnp.bfloat16)                 # (F, F) pixel rows
    w1xt = w1[F:, :].astype(jnp.float32)                 # (4, F) xyz+task rows
    b1 = params["b1"].reshape(1, F).astype(jnp.float32)
    w2 = params["w2"].astype(jnp.float32)                # (F, 2)
    b2 = params["b2"].reshape(1, 2).astype(jnp.float32)

    # bf16 on the dominant HBM stream; tiny (B, 4) side stream stays f32.
    px = pixel_feats.astype(jnp.bfloat16)
    xyzt = jnp.concatenate([xyzs, tasks], axis=-1).astype(jnp.float32)

    # Batch tile: big enough to amortize per-step overhead, but capped at
    # ceil(B/2) (rounded to the sublane) so grid >= 2 and both v7x
    # TensorCores get work.
    half = _round_up(max(1, -(-B // 2)), 8)
    tb = max(8, min(tile_b, half))
    grid = (pl.cdiv(B, tb),)

    def row_spec(width):
        return pl.BlockSpec((tb, width), lambda i: (i, 0))

    def resident(shape):
        # Same block index every grid step -> stays in VMEM, no re-DMA.
        return pl.BlockSpec(shape, lambda i: (0, 0))

    out = pl.pallas_call(
        _actionability_kernel,
        out_shape=jax.ShapeDtypeStruct((B, 2), jnp.float32),
        grid=grid,
        in_specs=[
            row_spec(F),                 # pixel_feats (bf16)
            row_spec(XT_DIM),            # xyz + task  (f32)
            resident((F, F)),            # w1 pixel block (bf16)
            resident((XT_DIM, F)),       # w1 xyz+task rows (f32)
            resident((1, F)),            # b1
            resident((F, 2)),            # w2
            resident((1, 2)),            # b2
        ],
        out_specs=row_spec(2),
        compiler_params=pltpu.CompilerParams(
            dimension_semantics=("parallel",),
            vmem_limit_bytes=48 * 1024 * 1024),  # > v5e's 16 MiB scoped default,
                                                 # < v7x's 64 MiB physical
    )(px, xyzt, w1p, w1xt, b1, w2, b2)

    actionability = out[:, 0:1]
    uncertainty = out[:, 1:2]
    return actionability, uncertainty


def init_params(key, point_feature_dimension):
    """Deterministic init mimicking nn.Linear default (uniform +-1/sqrt(fan_in))."""
    d_in = point_feature_dimension + XYZ_DIM + TASK_DIM
    k1, k2, k3, k4 = jax.random.split(key, 4)
    bound1 = 1.0 / jnp.sqrt(d_in)
    bound2 = 1.0 / jnp.sqrt(point_feature_dimension)
    return {
        "w1": jax.random.uniform(k1, (d_in, point_feature_dimension),
                                 jnp.float32, -bound1, bound1),
        "b1": jax.random.uniform(k2, (point_feature_dimension,),
                                 jnp.float32, -bound1, bound1),
        "w2": jax.random.uniform(k3, (point_feature_dimension, 2),
                                 jnp.float32, -bound2, bound2),
        "b2": jax.random.uniform(k4, (2,), jnp.float32, -bound2, bound2),
    }


def _reference(pixel_feats, xyzs, tasks, params):
    # Mirror the kernel's numerics: pixel stream + its weight block in bf16,
    # f32 accumulation; everything else f32.
    F = pixel_feats.shape[1]
    px = pixel_feats.astype(jnp.bfloat16).astype(jnp.float32)
    w1p = params["w1"][:F, :].astype(jnp.bfloat16).astype(jnp.float32)
    w1 = jnp.concatenate([w1p, params["w1"][F:, :]], axis=0)
    x = jnp.concatenate([px, xyzs, tasks], axis=-1)
    h = x @ w1 + params["b1"]
    h = jnp.where(h > 0, h, 0.01 * h)
    out = h @ params["w2"] + params["b2"]
    return out[:, 0:1], jnp.square(out[:, 1:2])


if __name__ == "__main__":
    B = 8
    FEAT = 32   # point_feature_dimension (small test shape)

    key = jax.random.PRNGKey(0)
    kp, kf, kx, kt = jax.random.split(key, 4)

    params = init_params(kp, FEAT)
    pixel_feats = jax.random.normal(kf, (B, FEAT), jnp.float32)
    xyzs = jax.random.normal(kx, (B, XYZ_DIM), jnp.float32)
    tasks = jax.random.normal(kt, (B, TASK_DIM), jnp.float32)

    act, unc = actionability_net(pixel_feats, xyzs, tasks, params)
    act = jax.block_until_ready(act)
    unc = jax.block_until_ready(unc)

    ref_act, ref_unc = _reference(pixel_feats, xyzs, tasks, params)
    assert act.shape == (B, 1) and unc.shape == (B, 1)
    assert jnp.allclose(act, ref_act, atol=5e-3, rtol=5e-3)
    assert jnp.allclose(unc, ref_unc, atol=5e-3, rtol=5e-3)

    print("KERNEL_OK")
</pallas_src>

<mosaic_0001>
module attributes {stable_mosaic.version = 11 : i64} {
  func.func @_actionability_kernel(%arg0: i32, %arg1: memref<8x32xbf16, #tpu.memory_space<vmem>>, %arg2: memref<8x4xf32, #tpu.memory_space<vmem>>, %arg3: memref<32x32xbf16, #tpu.memory_space<vmem>>, %arg4: memref<4x32xf32, #tpu.memory_space<vmem>>, %arg5: memref<1x32xf32, #tpu.memory_space<vmem>>, %arg6: memref<32x2xf32, #tpu.memory_space<vmem>>, %arg7: memref<1x2xf32, #tpu.memory_space<vmem>>, %arg8: memref<8x2xf32, #tpu.memory_space<vmem>>) attributes {dimension_semantics = [#tpu.dimension_semantics<parallel>], iteration_bounds = array<i64: 1>, scalar_prefetch = 0 : i64, scratch_operands = 0 : i64, tpu.core_type = #tpu.core_type<tc>, window_params = [{transform_indices = @transform_0, window_bounds = array<i64: 8, 32>}, {transform_indices = @transform_1, window_bounds = array<i64: 8, 4>}, {pipeline_mode = #tpu.pipeline_mode<synchronous>, transform_indices = @transform_2, window_bounds = array<i64: 32, 32>}, {pipeline_mode = #tpu.pipeline_mode<synchronous>, transform_indices = @transform_3, window_bounds = array<i64: 4, 32>}, {pipeline_mode = #tpu.pipeline_mode<synchronous>, transform_indices = @transform_4, window_bounds = array<i64: 1, 32>}, {pipeline_mode = #tpu.pipeline_mode<synchronous>, transform_indices = @transform_5, window_bounds = array<i64: 32, 2>}, {pipeline_mode = #tpu.pipeline_mode<synchronous>, transform_indices = @transform_6, window_bounds = array<i64: 1, 2>}, {transform_indices = @transform_7, window_bounds = array<i64: 8, 2>}]} {
    %c0 = arith.constant 0 : index
    %c0_0 = arith.constant 0 : index
    %0 = vector.load %arg1[%c0, %c0_0] : memref<8x32xbf16, #tpu.memory_space<vmem>>, vector<8x32xbf16>
    %c0_1 = arith.constant 0 : index
    %c0_2 = arith.constant 0 : index
    %1 = vector.load %arg3[%c0_1, %c0_2] : memref<32x32xbf16, #tpu.memory_space<vmem>>, vector<32x32xbf16>
    %cst = arith.constant dense<0.000000e+00> : vector<8x32xf32>
    %2 = tpu.matmul %0, %1, %cst {dimension_numbers = #tpu.dot_dimension_numbers<[1], [0], [0], [1], [0, 0, 1, 1], [], []>} : vector<8x32xbf16>, vector<32x32xbf16>, vector<8x32xf32> -> vector<8x32xf32>
    %c0_3 = arith.constant 0 : index
    %c0_4 = arith.constant 0 : index
    %3 = vector.load %arg2[%c0_3, %c0_4] : memref<8x4xf32, #tpu.memory_space<vmem>>, vector<8x4xf32>
    %4 = vector.extract_strided_slice %3 {offsets = [0, 0], sizes = [8, 1], strides = [1, 1]} : vector<8x4xf32> to vector<8x1xf32>
    %c0_5 = arith.constant 0 : index
    %c0_6 = arith.constant 0 : index
    %5 = vector.load %arg4[%c0_5, %c0_6] : memref<4x32xf32, #tpu.memory_space<vmem>>, vector<1x32xf32>
    %6 = vector.broadcast %4 : vector<8x1xf32> to vector<8x32xf32>
    %7 = vector.broadcast %5 : vector<1x32xf32> to vector<8x32xf32>
    %8 = arith.mulf %6, %7 : vector<8x32xf32>
    %9 = arith.addf %2, %8 : vector<8x32xf32>
    %10 = vector.extract_strided_slice %3 {offsets = [0, 1], sizes = [8, 1], strides = [1, 1]} : vector<8x4xf32> to vector<8x1xf32>
    %c1 = arith.constant 1 : index
    %c0_7 = arith.constant 0 : index
    %11 = vector.load %arg4[%c1, %c0_7] : memref<4x32xf32, #tpu.memory_space<vmem>>, vector<1x32xf32>
    %12 = vector.broadcast %10 : vector<8x1xf32> to vector<8x32xf32>
    %13 = vector.broadcast %11 : vector<1x32xf32> to vector<8x32xf32>
    %14 = arith.mulf %12, %13 : vector<8x32xf32>
    %15 = arith.addf %9, %14 : vector<8x32xf32>
    %16 = vector.extract_strided_slice %3 {offsets = [0, 2], sizes = [8, 1], strides = [1, 1]} : vector<8x4xf32> to vector<8x1xf32>
    %c2 = arith.constant 2 : index
    %c0_8 = arith.constant 0 : index
    %17 = vector.load %arg4[%c2, %c0_8] : memref<4x32xf32, #tpu.memory_space<vmem>>, vector<1x32xf32>
    %18 = vector.broadcast %16 : vector<8x1xf32> to vector<8x32xf32>
    %19 = vector.broadcast %17 : vector<1x32xf32> to vector<8x32xf32>
    %20 = arith.mulf %18, %19 : vector<8x32xf32>
    %21 = arith.addf %15, %20 : vector<8x32xf32>
    %22 = vector.extract_strided_slice %3 {offsets = [0, 3], sizes = [8, 1], strides = [1, 1]} : vector<8x4xf32> to vector<8x1xf32>
    %c3 = arith.constant 3 : index
    %c0_9 = arith.constant 0 : index
    %23 = vector.load %arg4[%c3, %c0_9] : memref<4x32xf32, #tpu.memory_space<vmem>>, vector<1x32xf32>
    %24 = vector.broadcast %22 : vector<8x1xf32> to vector<8x32xf32>
    %25 = vector.broadcast %23 : vector<1x32xf32> to vector<8x32xf32>
    %26 = arith.mulf %24, %25 : vector<8x32xf32>
    %27 = arith.addf %21, %26 : vector<8x32xf32>
    %c0_10 = arith.constant 0 : index
    %c0_11 = arith.constant 0 : index
    %28 = vector.load %arg5[%c0_10, %c0_11] : memref<1x32xf32, #tpu.memory_space<vmem>>, vector<1x32xf32>
    %29 = vector.broadcast %28 : vector<1x32xf32> to vector<8x32xf32>
    %30 = arith.addf %27, %29 : vector<8x32xf32>
    %cst_12 = arith.constant 0.00999999977 : f32
    %31 = vector.broadcast %cst_12 : f32 to vector<8x32xf32>
    %32 = arith.mulf %31, %30 : vector<8x32xf32>
    %33 = arith.maximumf %30, %32 : vector<8x32xf32>
    %c0_13 = arith.constant 0 : index
    %c0_14 = arith.constant 0 : index
    %34 = vector.load %arg6[%c0_13, %c0_14] : memref<32x2xf32, #tpu.memory_space<vmem>>, vector<32x2xf32>
    %cst_15 = arith.constant dense<0.000000e+00> : vector<8x2xf32>
    %35 = tpu.matmul %33, %34, %cst_15 {dimension_numbers = #tpu.dot_dimension_numbers<[1], [0], [0], [1], [0, 0, 1, 1], [], []>} : vector<8x32xf32>, vector<32x2xf32>, vector<8x2xf32> -> vector<8x2xf32>
    %c0_16 = arith.constant 0 : index
    %c0_17 = arith.constant 0 : index
    %36 = vector.load %arg7[%c0_16, %c0_17] : memref<1x2xf32, #tpu.memory_space<vmem>>, vector<1x2xf32>
    %37 = vector.broadcast %36 : vector<1x2xf32> to vector<8x2xf32>
    %38 = arith.addf %35, %37 : vector<8x2xf32>
    %39 = tpu.iota {dimensions = array<i32: 1>} : vector<8x2xi32>
    %c1_i32 = arith.constant 1 : i32
    %40 = vector.broadcast %c1_i32 : i32 to vector<8x2xi32>
    %41 = arith.cmpi eq, %39, %40 : vector<8x2xi32>
    %42 = arith.mulf %38, %38 : vector<8x2xf32>
    %43 = arith.select %41, %42, %38 : vector<8x2xi1>, vector<8x2xf32>
    %c0_18 = arith.constant 0 : index
    %c0_19 = arith.constant 0 : index
    %44 = vector.load %arg8[%c0_18, %c0_19] : memref<8x2xf32, #tpu.memory_space<vmem>>, vector<8x2xf32>
    tpu.vector_store %arg8[%c0_18, %c0_19], %43 {strides = array<i32>} : memref<8x2xf32, #tpu.memory_space<vmem>>, vector<8x2xf32>,
    return
  }
  func.func @transform_0(%arg0: i32) -> (i32, i32) {
    %c0_i32 = arith.constant 0 : i32
    %c0_i32_0 = arith.constant 0 : i32
    return %arg0, %c0_i32 : i32, i32
  }
  func.func @transform_1(%arg0: i32) -> (i32, i32) {
    %c0_i32 = arith.constant 0 : i32
    %c0_i32_0 = arith.constant 0 : i32
    return %arg0, %c0_i32 : i32, i32
  }
  func.func @transform_2(%arg0: i32) -> (i32, i32) {
    %c0_i32 = arith.constant 0 : i32
    %c0_i32_0 = arith.constant 0 : i32
    %c0_i32_1 = arith.constant 0 : i32
    return %c0_i32, %c0_i32_0 : i32, i32
  }
  func.func @transform_3(%arg0: i32) -> (i32, i32) {
    %c0_i32 = arith.constant 0 : i32
    %c0_i32_0 = arith.constant 0 : i32
    %c0_i32_1 = arith.constant 0 : i32
    return %c0_i32, %c0_i32_0 : i32, i32
  }
  func.func @transform_4(%arg0: i32) -> (i32, i32) {
    %c0_i32 = arith.constant 0 : i32
    %c0_i32_0 = arith.constant 0 : i32
    %c0_i32_1 = arith.constant 0 : i32
    return %c0_i32, %c0_i32_0 : i32, i32
  }
  func.func @transform_5(%arg0: i32) -> (i32, i32) {
    %c0_i32 = arith.constant 0 : i32
    %c0_i32_0 = arith.constant 0 : i32
    %c0_i32_1 = arith.constant 0 : i32
    return %c0_i32, %c0_i32_0 : i32, i32
  }
  func.func @transform_6(%arg0: i32) -> (i32, i32) {
    %c0_i32 = arith.constant 0 : i32
    %c0_i32_0 = arith.constant 0 : i32
    %c0_i32_1 = arith.constant 0 : i32
    return %c0_i32, %c0_i32_0 : i32, i32
  }
  func.func @transform_7(%arg0: i32) -> (i32, i32) {
    %c0_i32 = arith.constant 0 : i32
    %c0_i32_0 = arith.constant 0 : i32
    return %arg0, %c0_i32 : i32, i32
  }
}

</mosaic_0001>

<llo_original>
// kernel: tpu_custom_call.1
$region0: #{tpu_custom_call.1}
  #allocation0 [shape = 'u32[]', space=smem, size = 0x4, offset = 0x4, fixed_abs, tag = 'smem constant byte address 0x4 - core index']
  #allocation1 [shape = 'u32[144,128]{1,0:T(1,128)}', space=vmem, size = 0x12000, scoped, tag = 'internal scratch']
  %s0 = inlined_call_operand.vmem [shape: bf16[8,32], index: 0, kind: input, shape index: {}]
  %s1 = inlined_call_operand.vmem [shape: f32[8,4], index: 1, kind: input, shape index: {}]
  %s2 = inlined_call_operand.vmem [shape: bf16[32,32], index: 2, kind: input, shape index: {}]
  %s3 = inlined_call_operand.vmem [shape: f32[4,32], index: 3, kind: input, shape index: {}]
  %s4 = inlined_call_operand.vmem [shape: f32[1,32], index: 4, kind: input, shape index: {}]
  %s5 = inlined_call_operand.vmem [shape: f32[32,2], index: 5, kind: input, shape index: {}]
  %s6 = inlined_call_operand.vmem [shape: f32[1,2], index: 6, kind: input, shape index: {}]
  %s7 = inlined_call_operand.vmem [shape: f32[8,2], index: 7, kind: output, shape index: {}]
  %s8 = sld [smem:[#allocation0]]
  $region38: #{tpu_custom_call.1} parent=0
    _
  %s10 = ssub.s32 1, %s8
  %s11 = scalar_select 0, %s10, %s8
  // Predicated region
  $region2: #{tpu_custom_call.1} parent=0 // pred_check
    _
  $region3: #{tpu_custom_call.1} parent=0 // pred_check_branch
    %13 = sbr.rel (0) target = $region5
  $region4: #{tpu_custom_call.1} parent=0 // pred_region
    _
  $region5: #{tpu_custom_call.1} parent=0 // pred_fallthru
    _
  // Predicated region
  $region6: #{tpu_custom_call.1} parent=0 // pred_check
    _
  $region7: #{tpu_custom_call.1} parent=0 // pred_check_branch
    %15 = sbr.rel (0) target = $region9
  $region8: #{tpu_custom_call.1} parent=0 // pred_region
    _
  $region9: #{tpu_custom_call.1} parent=0 // pred_fallthru
    _
  // Predicated region
  $region10: #{tpu_custom_call.1} parent=0 // pred_check
    _
  $region11: #{tpu_custom_call.1} parent=0 // pred_check_branch
    %17 = sbr.rel (0) target = $region13
  $region12: #{tpu_custom_call.1} parent=0 // pred_region
    _
  $region13: #{tpu_custom_call.1} parent=0 // pred_fallthru
    _
  // Predicated region
  $region14: #{tpu_custom_call.1} parent=0 // pred_check
    _
  $region15: #{tpu_custom_call.1} parent=0 // pred_check_branch
    %19 = sbr.rel (0) target = $region17
  $region16: #{tpu_custom_call.1} parent=0 // pred_region
    _
  $region17: #{tpu_custom_call.1} parent=0 // pred_fallthru
    _
  // Predicated region
  $region18: #{tpu_custom_call.1} parent=0 // pred_check
    _
  $region19: #{tpu_custom_call.1} parent=0 // pred_check_branch
    %21 = sbr.rel (0) target = $region21
  $region20: #{tpu_custom_call.1} parent=0 // pred_region
    _
  $region21: #{tpu_custom_call.1} parent=0 // pred_fallthru
    _
  // Predicated region
  $region22: #{tpu_custom_call.1} parent=0 // pred_check
    _
  $region23: #{tpu_custom_call.1} parent=0 // pred_check_branch
    %23 = sbr.rel (0) target = $region25
  $region24: #{tpu_custom_call.1} parent=0 // pred_region
    _
  $region25: #{tpu_custom_call.1} parent=0 // pred_fallthru
    _
  // Predicated region
  $region26: #{tpu_custom_call.1} parent=0 // pred_check
    _
  $region27: #{tpu_custom_call.1} parent=0 // pred_check_branch
    %25 = sbr.rel (0) target = $region29
  $region28: #{tpu_custom_call.1} parent=0 // pred_region
    _
  $region29: #{tpu_custom_call.1} parent=0 // pred_fallthru
    _
  %v27 = vld [vmem:[%s0] sm:$0xf]
  %v28 = vld [vmem:[%s2] sm:$0xf]
  %v29 = vld [vmem:[%s2 + $0x4] sm:$0xf]
  %v30 = vld [vmem:[%s2 + $0x8] sm:$0xf]
  %v31 = vld [vmem:[%s2 + $0xc] sm:$0xf]
  %v32 = vld [vmem:[%s1] sm:$0xff]
  %v33 = vld [vmem:[%s3] sm:$0x1]
  %35 = vset.pattern.permute.xlu0 0
  %36 = vperm.xlu0 %35, %v32
  %v37 = vpop.permute.xlu0 %36
  %v39 = vlaneseq
  %v40 = vshrl.u32 %v39, 7
  %v41 = vsub.s32 0, %v40
  %v42 = vrot.slane %v33, %v41
  %v43 = vmul.f32 %v37, %v42
  %v48 = vunpack.c.l.b16 %v28
  %v49 = vunpack.c.l.b16 %v29
  %v50 = vunpack.c.l.b16 %v30
  %v51 = vunpack.c.l.b16 %v31
  %v52 = vpack.c.b16 %v49, %v48
  %v53 = vpack.c.b16 %v51, %v50
  %vm56 = vcmask 261120
  %v58 = vsel %vm56, %v27, 0
  %60 = vmatprep.subr.bf16.mxu0 0
  %61 = vmatpush1.bf16.msra.mxu0 0
  %62 = vmatprep.subr.bf16.mxu0 0
  %63 = vmatpush1.bf16.msra.mxu0 0
  %64 = vmatprep.subr.bf16.mxu0 0
  %65 = vmatpush1.bf16.msra.mxu0 0
  %66 = vmatprep.subr.bf16.mxu0 0
  %67 = vmatpush1.bf16.msra.mxu0 0
  %68 = vmatprep.subr.bf16.mxu0 0
  %69 = vmatpush1.bf16.msra.mxu0 0
  %70 = vmatprep.subr.bf16.mxu0 0
  %71 = vmatpush1.bf16.msra.mxu0 0
  %72 = vmatprep.subr.bf16.mxu0 0
  %73 = vmatpush1.bf16.msra.mxu0 %v53
  %74 = vmatprep.subr.bf16.mxu0 0
  %75 = vmatpush1.bf16.msra.mxu0 %v52
  %76 = vmatprep.subr.bf16.mxu0 0
  %77 = vmatpush2.bf16.msra.mxu0 0
  %78 = vmatprep.subr.bf16.mxu0 0
  %79 = vmatpush2.bf16.msra.mxu0 0
  %80 = vmatprep.subr.bf16.mxu0 0
  %81 = vmatpush2.bf16.msra.mxu0 0
  %82 = vmatprep.subr.bf16.mxu0 0
  %83 = vmatpush2.bf16.msra.mxu0 0
  %84 = vmatprep.subr.bf16.mxu0 0
  %85 = vmatpush2.bf16.msra.mxu0 0
  %86 = vmatprep.subr.bf16.mxu0 0
  %87 = vmatpush2.bf16.msra.mxu0 0
  %88 = vmatprep.subr.bf16.mxu0 0
  %89 = vmatpush2.bf16.msra.mxu0 0
  %90 = vmatprep.subr.bf16.mxu0 0
  %91 = vmatpush2.bf16.msra.mxu0 0
  %92 = vmatprep.mubr.bf16.mxu0 0
  %93 = vmatmul.mubr.bf16.gmra.mxu0 %v58
  %v94 = vpop.f32.mrf.mxu0
  %v95 = vadd.f32 %v43, %v94
  %v96 = vpop.f32.mrf.mxu0
  %v97 = vpop.f32.mrf.mxu0
  %v98 = vpop.f32.mrf.mxu0
  %99 = vdwg.mxu0
  %v100 = vld [vmem:[%s3 + $0x1] sm:$0x1]
  %101 = vset.pattern.permute.xlu0 1
  %102 = vperm.xlu0 %101, %v32
  %v103 = vpop.permute.xlu0 %102
  %v105 = vlaneseq
  %v106 = vshrl.u32 %v105, 7
  %v107 = vsub.s32 0, %v106
  %v108 = vrot.slane %v100, %v107
  %v109 = vmul.f32 %v103, %v108
  %v110 = vadd.f32 %v95, %v109
  %v111 = vld [vmem:[%s3 + $0x2] sm:$0x1]
  %112 = vset.pattern.permute.xlu0 2
  %113 = vperm.xlu0 %112, %v32
  %v114 = vpop.permute.xlu0 %113
  %v116 = vlaneseq
  %v117 = vshrl.u32 %v116, 7
  %v118 = vsub.s32 0, %v117
  %v119 = vrot.slane %v111, %v118
  %v120 = vmul.f32 %v114, %v119
  %v121 = vadd.f32 %v110, %v120
  %v122 = vld [vmem:[%s3 + $0x3] sm:$0x1]
  %123 = vset.pattern.permute.xlu0 3
  %124 = vperm.xlu0 %123, %v32
  %v125 = vpop.permute.xlu0 %124
  %v127 = vlaneseq
  %v128 = vshrl.u32 %v127, 7
  %v129 = vsub.s32 0, %v128
  %v130 = vrot.slane %v122, %v129
  %v131 = vmul.f32 %v125, %v130
  %v132 = vadd.f32 %v121, %v131
  %v133 = vld [vmem:[%s4] sm:$0x1]
  %v135 = vlaneseq
  %v136 = vshrl.u32 %v135, 7
  %v137 = vsub.s32 0, %v136
  %v138 = vrot.slane %v133, %v137
  %v140 = vadd.f32 %v132, %v138
  %v141 = vmul.f32 %v140, 0.01
  %v142 = vmax.f32 %v140, %v141
  %v143 = vld [vmem:[%s5] sm:$0xff]
  %v144 = vld [vmem:[%s5 + $0x8] sm:$0xff]
  %v145 = vld [vmem:[%s5 + $0x10] sm:$0xff]
  %v146 = vld [vmem:[%s5 + $0x18] sm:$0xff]
  %v147 = vld [vmem:[%s6] sm:$0x1]
  %v149 = vlaneseq
  %v150 = vshrl.u32 %v149, 7
  %v151 = vsub.s32 0, %v150
  %v152 = vrot.slane %v147, %v151
  %v155 = vsel %vm56, %v142, 0
  %157 = vmatprep.subr.mxu0 0.0
  %158 = vmatpush1.msra.mxu0 0.0
  %159 = vmatprep.subr.mxu0 0.0
  %160 = vmatpush1.msra.mxu0 0.0
  %161 = vmatprep.subr.mxu0 0.0
  %162 = vmatpush1.msra.mxu0 0.0
  %163 = vmatprep.subr.mxu0 0.0
  %164 = vmatpush1.msra.mxu0 0.0
  %165 = vmatprep.subr.mxu0 0.0
  %166 = vmatpush1.msra.mxu0 0.0
  %167 = vmatprep.subr.mxu0 0.0
  %168 = vmatpush1.msra.mxu0 0.0
  %169 = vmatprep.subr.mxu0 0.0
  %170 = vmatpush1.msra.mxu0 0.0
  %171 = vmatprep.subr.mxu0 0.0
  %172 = vmatpush1.msra.mxu0 0.0
  %173 = vmatprep.subr.mxu0 0.0
  %174 = vmatpush1.msra.mxu0 0.0
  %175 = vmatprep.subr.mxu0 0.0
  %176 = vmatpush1.msra.mxu0 0.0
  %177 = vmatprep.subr.mxu0 0.0
  %178 = vmatpush1.msra.mxu0 0.0
  %179 = vmatprep.subr.mxu0 0.0
  %180 = vmatpush1.msra.mxu0 0.0
  %181 = vmatprep.subr.mxu0 0.0
  %182 = vmatpush1.msra.mxu0 %v146
  %183 = vmatprep.subr.mxu0 0.0
  %184 = vmatpush1.msra.mxu0 %v145
  %185 = vmatprep.subr.mxu0 0.0
  %186 = vmatpush1.msra.mxu0 %v144
  %187 = vmatprep.subr.mxu0 0.0
  %188 = vmatpush1.msra.mxu0 %v143
  %189 = vmatprep.subr.mxu0 0.0
  %190 = vmatpush2.msra.mxu0 0.0
  %191 = vmatprep.subr.mxu0 0.0
  %192 = vmatpush2.msra.mxu0 0.0
  %193 = vmatprep.subr.mxu0 0.0
  %194 = vmatpush2.msra.mxu0 0.0
  %195 = vmatprep.subr.mxu0 0.0
  %196 = vmatpush2.msra.mxu0 0.0
  %197 = vmatprep.subr.mxu0 0.0
  %198 = vmatpush2.msra.mxu0 0.0
  %199 = vmatprep.subr.mxu0 0.0
  %200 = vmatpush2.msra.mxu0 0.0
  %201 = vmatprep.subr.mxu0 0.0
  %202 = vmatpush2.msra.mxu0 0.0
  %203 = vmatprep.subr.mxu0 0.0
  %204 = vmatpush2.msra.mxu0 0.0
  %205 = vmatprep.subr.mxu0 0.0
  %206 = vmatpush2.msra.mxu0 0.0
  %207 = vmatprep.subr.mxu0 0.0
  %208 = vmatpush2.msra.mxu0 0.0
  %209 = vmatprep.subr.mxu0 0.0
  %210 = vmatpush2.msra.mxu0 0.0
  %211 = vmatprep.subr.mxu0 0.0
  %212 = vmatpush2.msra.mxu0 0.0
  %213 = vmatprep.subr.mxu0 0.0
  %214 = vmatpush2.msra.mxu0 0.0
  %215 = vmatprep.subr.mxu0 0.0
  %216 = vmatpush2.msra.mxu0 0.0
  %217 = vmatprep.subr.mxu0 0.0
  %218 = vmatpush2.msra.mxu0 0.0
  %219 = vmatprep.subr.mxu0 0.0
  %220 = vmatpush2.msra.mxu0 0.0
  %221 = vmatprep.mubr.f32.mxu0 0.0
  %222 = vmatmul.mubr.f32.gmra.mxu0 %v155
  %v223 = vpop.f32.mrf.mxu0
  %v224 = vadd.f32 %v152, %v223
  %v225 = vpop.f32.mrf.mxu0
  %226 = vdwg.mxu0
  %v227 = vlaneseq
  %v228 = vand.u32 %v227, 127
  %vm229 = vcmp.eq.s32.totalorder %v228, 1
  %v230 = vmul.f32 %v224, %v224
  %v231 = vsel %vm229, %v230, %v224
  %vm232 = vcmask 15360
  %233 = vst.msk [vmem:[%s7] sm:$0xff] %vm232, %v231
  // Predicated region
  $region30: #{tpu_custom_call.1} parent=0 // pred_check
    _
  $region31: #{tpu_custom_call.1} parent=0 // pred_check_branch
    %235 = sbr.rel (0) target = $region33
  $region32: #{tpu_custom_call.1} parent=0 // pred_region
    _
  $region33: #{tpu_custom_call.1} parent=0 // pred_fallthru
    _
  // Predicated region
  $region34: #{tpu_custom_call.1} parent=0 // pred_check
    _
  $region35: #{tpu_custom_call.1} parent=0 // pred_check_branch
    %237 = sbr.rel (0) target = $region37
  $region36: #{tpu_custom_call.1} parent=0 // pred_region
    _
  $region37: #{tpu_custom_call.1} parent=0 // pred_fallthru
    _

</llo_original>
